<compile_context>
chip_gen: v7x
topology: tpu7x:2x2x1
jax: 0.10.0
libtpu: 0.0.40
codegen_flags: <defaults>
</compile_context>

<pallas_src>
import functools

import jax
import jax.numpy as jnp
from jax.experimental import pallas as pl
from jax.experimental.pallas import tpu as pltpu

_LANE = 128      # vreg lane width
_SUBLANE = 8     # f32 sublane width


def _round_up(x, m):
    return (x + m - 1) // m * m


def _pick_tile_m(m_rows):
    """Large row tile (<=512), multiple of 8/128, keep >=2 grid steps if possible."""
    tile = 512
    while tile > 128 and pl.cdiv(m_rows, tile) < 2:
        tile //= 2
    return tile


def _fcn_kernel(x_ref, w0_ref, b0_ref, wh_ref, bh_ref, we_ref, be_ref, out_ref,
                *, n_hidden_layers):
    # First layer: Linear(N_INPUT, Hp) + tanh
    h = jnp.tanh(
        jnp.dot(x_ref[...], w0_ref[...], preferred_element_type=jnp.float32)
        + b0_ref[...]
    )
    # Hidden layers: (Linear(Hp, Hp) + tanh) * (N_LAYERS - 1); static Python loop.
    for l in range(n_hidden_layers):
        h = jnp.tanh(
            jnp.dot(h, wh_ref[l], preferred_element_type=jnp.float32)
            + bh_ref[l]
        )
    # Final layer: Linear(Hp, Op), no activation. Lane-dense (Op is a multiple of 128).
    out_ref[...] = (
        jnp.dot(h, we_ref[...], preferred_element_type=jnp.float32)
        + be_ref[...]
    ).astype(out_ref.dtype)


def fcn_forward(x, params, *, tile_m=None):
    """Fused FCN forward pass.

    x: [M, N_INPUT] float32
    params: dict with w0 [N_INPUT,H], b0 [1,H], wh [L-1,H,H], bh [L-1,1,H],
            we [H,N_OUTPUT], be [1,N_OUTPUT]   (weights stored as [in, out])
    Returns [M, N_OUTPUT] float32.
    """
    w0, b0, wh, bh, we, be = (params[k] for k in ("w0", "b0", "wh", "bh", "we", "be"))
    M, n_in = x.shape
    n_hidden = w0.shape[1]
    n_out = we.shape[1]
    n_hidden_layers = int(wh.shape[0])

    # ---- pad feature dims to the 128-lane width (exact math: zero padding) ----
    hp = max(_LANE, _round_up(n_hidden, _LANE))
    op = max(_LANE, _round_up(n_out, _LANE))

    f32 = jnp.float32
    w0p = jnp.zeros((n_in, hp), f32).at[:, :n_hidden].set(w0.astype(f32))
    b0p = jnp.zeros((1, hp), f32).at[:, :n_hidden].set(b0.astype(f32))
    if n_hidden_layers > 0:
        whp = jnp.zeros((n_hidden_layers, hp, hp), f32).at[:, :n_hidden, :n_hidden].set(
            wh.astype(f32))
        bhp = jnp.zeros((n_hidden_layers, 1, hp), f32).at[:, :, :n_hidden].set(
            bh.astype(f32))
    else:  # N_LAYERS == 1: dummy (unused) stacked weight so shapes stay valid
        whp = jnp.zeros((1, hp, hp), f32)
        bhp = jnp.zeros((1, 1, hp), f32)
    wep = jnp.zeros((hp, op), f32).at[:n_hidden, :n_out].set(we.astype(f32))
    bep = jnp.zeros((1, op), f32).at[:, :n_out].set(be.astype(f32))

    # ---- pad batch rows to the tile size (no divisibility assert) ----
    if tile_m is None:
        tile_m = _pick_tile_m(M)
    assert tile_m % _SUBLANE == 0
    mp = _round_up(M, tile_m)
    xp = x.astype(f32)
    if mp != M:
        xp = jnp.zeros((mp, n_in), f32).at[:M, :].set(xp)

    grid = (mp // tile_m,)

    # ---- advisory cost estimate for the XLA scheduler ----
    flops = 2 * mp * (n_in * hp + n_hidden_layers * hp * hp + hp * op)
    transcendentals = mp * hp * (n_hidden_layers + 1)
    bytes_accessed = 4 * (xp.size + w0p.size + b0p.size + whp.size + bhp.size
                          + wep.size + bep.size + mp * op)
    cost = pl.CostEstimate(flops=flops, transcendentals=transcendentals,
                           bytes_accessed=bytes_accessed)

    # ---- explicit VMEM budget: 2x (double-buffered) weights + activation tiles + slack ----
    weight_bytes = 4 * (w0p.size + b0p.size + whp.size + bhp.size + wep.size + bep.size)
    act_bytes = 4 * tile_m * (n_in + hp + op)
    vmem_limit = int(max(16 * 1024 * 1024, 2 * weight_bytes + 4 * act_bytes + (4 << 20)))

    kernel = functools.partial(_fcn_kernel, n_hidden_layers=n_hidden_layers)

    out_p = pl.pallas_call(
        kernel,
        out_shape=jax.ShapeDtypeStruct((mp, op), f32),
        grid_spec=pltpu.PrefetchScalarGridSpec(
            num_scalar_prefetch=0,
            grid=grid,
            in_specs=[
                pl.BlockSpec((tile_m, n_in), lambda i: (i, 0)),   # x tile
                pl.BlockSpec(w0p.shape, lambda i: (0, 0)),        # w0 (resident)
                pl.BlockSpec(b0p.shape, lambda i: (0, 0)),        # b0
                pl.BlockSpec(whp.shape, lambda i: (0, 0, 0)),     # stacked hidden W
                pl.BlockSpec(bhp.shape, lambda i: (0, 0, 0)),     # stacked hidden b
                pl.BlockSpec(wep.shape, lambda i: (0, 0)),        # we
                pl.BlockSpec(bep.shape, lambda i: (0, 0)),        # be
            ],
            out_specs=pl.BlockSpec((tile_m, op), lambda i: (i, 0)),  # lane-dense store
        ),
        compiler_params=pltpu.CompilerParams(
            dimension_semantics=("parallel",),
            vmem_limit_bytes=vmem_limit,
        ),
        cost_estimate=cost,
    )(xp, w0p, b0p, whp, bhp, wep, bep)

    # Strip batch / output padding.
    return out_p[:M, :n_out]


def fcn_forward_darcy(x4d, params, *, tile_m=None):
    """is_darcy=True path: reshape [B,C,H,W] -> [-1, N_INPUT], run, reshape back to [B,1,H,W]."""
    b, _, h, w = x4d.shape
    n_in = params["w0"].shape[0]
    flat = x4d.reshape(-1, n_in)
    out = fcn_forward(flat, params, tile_m=tile_m)
    return out.reshape(b, 1, h, w)


def init_fcn_params(key, n_input, n_output, n_hidden, n_layers):
    """Deterministic synthetic parameter init (weights stored as [in, out])."""
    ks = jax.random.split(key, 6)
    scale = 0.1
    n_hid_layers = max(n_layers - 1, 0)
    w0 = scale * jax.random.normal(ks[0], (n_input, n_hidden), jnp.float32)
    b0 = scale * jax.random.normal(ks[1], (1, n_hidden), jnp.float32)
    wh = scale * jax.random.normal(ks[2], (n_hid_layers, n_hidden, n_hidden), jnp.float32)
    bh = scale * jax.random.normal(ks[3], (n_hid_layers, 1, n_hidden), jnp.float32)
    we = scale * jax.random.normal(ks[4], (n_hidden, n_output), jnp.float32)
    be = scale * jax.random.normal(ks[5], (1, n_output), jnp.float32)
    return dict(w0=w0, b0=b0, wh=wh, bh=bh, we=we, be=be)


def fcn_reference(x, params):
    """Pure-JAX reference of the same forward pass."""
    h = jnp.tanh(x @ params["w0"] + params["b0"])
    for l in range(params["wh"].shape[0]):
        h = jnp.tanh(h @ params["wh"][l] + params["bh"][l])
    return h @ params["we"] + params["be"]


if __name__ == "__main__":
    # Small PINN-style config: 2 inputs (x, t), 1 output, 32 hidden, 3 layers.
    N_INPUT, N_OUTPUT, N_HIDDEN, N_LAYERS = 2, 1, 32, 3
    BATCH = 200  # deliberately NOT a multiple of the tile -> exercises batch padding

    key = jax.random.PRNGKey(0)
    k_x, k_p, k_d = jax.random.split(key, 3)
    x = jax.random.normal(k_x, (BATCH, N_INPUT), jnp.float32)
    params = init_fcn_params(k_p, N_INPUT, N_OUTPUT, N_HIDDEN, N_LAYERS)

    # Flat (is_darcy=False) path.
    out = fcn_forward(x, params)
    out = jax.block_until_ready(out)
    ref = fcn_reference(x, params)
    assert out.shape == (BATCH, N_OUTPUT)
    assert jnp.allclose(out, ref, atol=1e-5, rtol=1e-5), "mismatch vs reference (flat)"

    # is_darcy=True path (pure reshape glue around the same kernel).
    xd = jax.random.normal(k_d, (2, N_INPUT, 8, 8), jnp.float32)
    outd = jax.block_until_ready(fcn_forward_darcy(xd, params))
    refd = fcn_reference(xd.reshape(-1, N_INPUT), params).reshape(2, 1, 8, 8)
    assert outd.shape == (2, 1, 8, 8)
    assert jnp.allclose(outd, refd, atol=1e-5, rtol=1e-5), "mismatch vs reference (darcy)"

    print("KERNEL_OK")
</pallas_src>

<mosaic_0001>
module attributes {stable_mosaic.version = 11 : i64} {
  func.func @_fcn_kernel(%arg0: i32, %arg1: memref<128x2xf32, #tpu.memory_space<vmem>>, %arg2: memref<2x128xf32, #tpu.memory_space<vmem>>, %arg3: memref<1x128xf32, #tpu.memory_space<vmem>>, %arg4: memref<2x128x128xf32, #tpu.memory_space<vmem>>, %arg5: memref<2x1x128xf32, #tpu.memory_space<vmem>>, %arg6: memref<128x128xf32, #tpu.memory_space<vmem>>, %arg7: memref<1x128xf32, #tpu.memory_space<vmem>>, %arg8: memref<128x128xf32, #tpu.memory_space<vmem>>) attributes {dimension_semantics = [#tpu.dimension_semantics<parallel>], iteration_bounds = array<i64: 2>, scalar_prefetch = 0 : i64, scratch_operands = 0 : i64, tpu.core_type = #tpu.core_type<tc>, window_params = [{transform_indices = @transform_0, window_bounds = array<i64: 128, 2>}, {pipeline_mode = #tpu.pipeline_mode<synchronous>, transform_indices = @transform_1, window_bounds = array<i64: 2, 128>}, {pipeline_mode = #tpu.pipeline_mode<synchronous>, transform_indices = @transform_2, window_bounds = array<i64: 1, 128>}, {pipeline_mode = #tpu.pipeline_mode<synchronous>, transform_indices = @transform_3, window_bounds = array<i64: 2, 128, 128>}, {pipeline_mode = #tpu.pipeline_mode<synchronous>, transform_indices = @transform_4, window_bounds = array<i64: 2, 1, 128>}, {pipeline_mode = #tpu.pipeline_mode<synchronous>, transform_indices = @transform_5, window_bounds = array<i64: 128, 128>}, {pipeline_mode = #tpu.pipeline_mode<synchronous>, transform_indices = @transform_6, window_bounds = array<i64: 1, 128>}, {transform_indices = @transform_7, window_bounds = array<i64: 128, 128>}]} {
    %c0 = arith.constant 0 : index
    %c0_0 = arith.constant 0 : index
    %0 = vector.load %arg1[%c0, %c0_0] : memref<128x2xf32, #tpu.memory_space<vmem>>, vector<128x2xf32>
    %c0_1 = arith.constant 0 : index
    %c0_2 = arith.constant 0 : index
    %1 = vector.load %arg2[%c0_1, %c0_2] : memref<2x128xf32, #tpu.memory_space<vmem>>, vector<2x128xf32>
    %cst = arith.constant dense<0.000000e+00> : vector<128x128xf32>
    %2 = tpu.matmul %0, %1, %cst {dimension_numbers = #tpu.dot_dimension_numbers<[1], [0], [0], [1], [0, 0, 1, 1], [], []>} : vector<128x2xf32>, vector<2x128xf32>, vector<128x128xf32> -> vector<128x128xf32>
    %c0_3 = arith.constant 0 : index
    %c0_4 = arith.constant 0 : index
    %3 = vector.load %arg3[%c0_3, %c0_4] : memref<1x128xf32, #tpu.memory_space<vmem>>, vector<1x128xf32>
    %4 = vector.broadcast %3 : vector<1x128xf32> to vector<128x128xf32>
    %5 = arith.addf %2, %4 : vector<128x128xf32>
    %6 = math.tanh %5 : vector<128x128xf32>
    %c0_5 = arith.constant 0 : index
    %c0_6 = arith.constant 0 : index
    %c0_7 = arith.constant 0 : index
    %7 = vector.load %arg4[%c0_5, %c0_6, %c0_7] : memref<2x128x128xf32, #tpu.memory_space<vmem>>, vector<1x128x128xf32>
    %8 = vector.shape_cast %7 : vector<1x128x128xf32> to vector<128x128xf32>
    %cst_8 = arith.constant dense<0.000000e+00> : vector<128x128xf32>
    %9 = tpu.matmul %6, %8, %cst_8 {dimension_numbers = #tpu.dot_dimension_numbers<[1], [0], [0], [1], [0, 0, 1, 1], [], []>} : vector<128x128xf32>, vector<128x128xf32>, vector<128x128xf32> -> vector<128x128xf32>
    %c0_9 = arith.constant 0 : index
    %c0_10 = arith.constant 0 : index
    %c0_11 = arith.constant 0 : index
    %10 = vector.load %arg5[%c0_9, %c0_10, %c0_11] : memref<2x1x128xf32, #tpu.memory_space<vmem>>, vector<1x1x128xf32>
    %11 = vector.shape_cast %10 : vector<1x1x128xf32> to vector<1x128xf32>
    %12 = vector.broadcast %11 : vector<1x128xf32> to vector<128x128xf32>
    %13 = arith.addf %9, %12 : vector<128x128xf32>
    %14 = math.tanh %13 : vector<128x128xf32>
    %c1 = arith.constant 1 : index
    %c0_12 = arith.constant 0 : index
    %c0_13 = arith.constant 0 : index
    %15 = vector.load %arg4[%c1, %c0_12, %c0_13] : memref<2x128x128xf32, #tpu.memory_space<vmem>>, vector<1x128x128xf32>
    %16 = vector.shape_cast %15 : vector<1x128x128xf32> to vector<128x128xf32>
    %cst_14 = arith.constant dense<0.000000e+00> : vector<128x128xf32>
    %17 = tpu.matmul %14, %16, %cst_14 {dimension_numbers = #tpu.dot_dimension_numbers<[1], [0], [0], [1], [0, 0, 1, 1], [], []>} : vector<128x128xf32>, vector<128x128xf32>, vector<128x128xf32> -> vector<128x128xf32>
    %c1_15 = arith.constant 1 : index
    %c0_16 = arith.constant 0 : index
    %c0_17 = arith.constant 0 : index
    %18 = vector.load %arg5[%c1_15, %c0_16, %c0_17] : memref<2x1x128xf32, #tpu.memory_space<vmem>>, vector<1x1x128xf32>
    %19 = vector.shape_cast %18 : vector<1x1x128xf32> to vector<1x128xf32>
    %20 = vector.broadcast %19 : vector<1x128xf32> to vector<128x128xf32>
    %21 = arith.addf %17, %20 : vector<128x128xf32>
    %22 = math.tanh %21 : vector<128x128xf32>
    %c0_18 = arith.constant 0 : index
    %c0_19 = arith.constant 0 : index
    %23 = vector.load %arg6[%c0_18, %c0_19] : memref<128x128xf32, #tpu.memory_space<vmem>>, vector<128x128xf32>
    %cst_20 = arith.constant dense<0.000000e+00> : vector<128x128xf32>
    %24 = tpu.matmul %22, %23, %cst_20 {dimension_numbers = #tpu.dot_dimension_numbers<[1], [0], [0], [1], [0, 0, 1, 1], [], []>} : vector<128x128xf32>, vector<128x128xf32>, vector<128x128xf32> -> vector<128x128xf32>
    %c0_21 = arith.constant 0 : index
    %c0_22 = arith.constant 0 : index
    %25 = vector.load %arg7[%c0_21, %c0_22] : memref<1x128xf32, #tpu.memory_space<vmem>>, vector<1x128xf32>
    %26 = vector.broadcast %25 : vector<1x128xf32> to vector<128x128xf32>
    %27 = arith.addf %24, %26 : vector<128x128xf32>
    %c0_23 = arith.constant 0 : index
    %c0_24 = arith.constant 0 : index
    %28 = vector.load %arg8[%c0_23, %c0_24] : memref<128x128xf32, #tpu.memory_space<vmem>>, vector<128x128xf32>
    tpu.vector_store %arg8[%c0_23, %c0_24], %27 {strides = array<i32>} : memref<128x128xf32, #tpu.memory_space<vmem>>, vector<128x128xf32>,
    return
  }
  func.func @transform_0(%arg0: i32) -> (i32, i32) {
    %c0_i32 = arith.constant 0 : i32
    %c0_i32_0 = arith.constant 0 : i32
    return %arg0, %c0_i32 : i32, i32
  }
  func.func @transform_1(%arg0: i32) -> (i32, i32) {
    %c0_i32 = arith.constant 0 : i32
    %c0_i32_0 = arith.constant 0 : i32
    %c0_i32_1 = arith.constant 0 : i32
    return %c0_i32, %c0_i32_0 : i32, i32
  }
  func.func @transform_2(%arg0: i32) -> (i32, i32) {
    %c0_i32 = arith.constant 0 : i32
    %c0_i32_0 = arith.constant 0 : i32
    %c0_i32_1 = arith.constant 0 : i32
    return %c0_i32, %c0_i32_0 : i32, i32
  }
  func.func @transform_3(%arg0: i32) -> (i32, i32, i32) {
    %c0_i32 = arith.constant 0 : i32
    %c0_i32_0 = arith.constant 0 : i32
    %c0_i32_1 = arith.constant 0 : i32
    %c0_i32_2 = arith.constant 0 : i32
    return %c0_i32, %c0_i32_0, %c0_i32_1 : i32, i32, i32
  }
  func.func @transform_4(%arg0: i32) -> (i32, i32, i32) {
    %c0_i32 = arith.constant 0 : i32
    %c0_i32_0 = arith.constant 0 : i32
    %c0_i32_1 = arith.constant 0 : i32
    %c0_i32_2 = arith.constant 0 : i32
    return %c0_i32, %c0_i32_0, %c0_i32_1 : i32, i32, i32
  }
  func.func @transform_5(%arg0: i32) -> (i32, i32) {
    %c0_i32 = arith.constant 0 : i32
    %c0_i32_0 = arith.constant 0 : i32
    %c0_i32_1 = arith.constant 0 : i32
    return %c0_i32, %c0_i32_0 : i32, i32
  }
  func.func @transform_6(%arg0: i32) -> (i32, i32) {
    %c0_i32 = arith.constant 0 : i32
    %c0_i32_0 = arith.constant 0 : i32
    %c0_i32_1 = arith.constant 0 : i32
    return %c0_i32, %c0_i32_0 : i32, i32
  }
  func.func @transform_7(%arg0: i32) -> (i32, i32) {
    %c0_i32 = arith.constant 0 : i32
    %c0_i32_0 = arith.constant 0 : i32
    return %arg0, %c0_i32 : i32, i32
  }
}

</mosaic_0001>

<llo_original>
// kernel: tpu_custom_call.1
$region0: #{tpu_custom_call.1}
  #allocation0 [shape = 'u32[]', space=smem, size = 0x4, offset = 0x4, fixed_abs, tag = 'smem constant byte address 0x4 - core index']
  #allocation1 [shape = 'u32[144,128]{1,0:T(1,128)}', space=vmem, size = 0x12000, scoped, tag = 'internal scratch']
  %s0 = inlined_call_operand.vmem [shape: f32[256,2], index: 0, kind: input, shape index: {}]
  %s1 = inlined_call_operand.vmem [shape: f32[2,128], index: 1, kind: input, shape index: {}]
  %s2 = inlined_call_operand.vmem [shape: f32[1,128], index: 2, kind: input, shape index: {}]
  %s3 = inlined_call_operand.vmem [shape: f32[2,128,128], index: 3, kind: input, shape index: {}]
  %s4 = inlined_call_operand.vmem [shape: f32[2,1,128], index: 4, kind: input, shape index: {}]
  %s5 = inlined_call_operand.hbm [shape: f32[128,128], index: 5, kind: input, shape index: {}]
  %s6 = inlined_call_operand.vmem [shape: f32[1,128], index: 6, kind: input, shape index: {}]
  %s7 = inlined_call_operand.hbm [shape: f32[256,128], index: 7, kind: output, shape index: {}]
  %s8 = sld [smem:[#allocation0]]
  $region65: #{tpu_custom_call.1} parent=0
    _
  %s10 = ssub.s32 1, %s8
  %s11 = scalar_select 0, %s10, %s8
  $region1: #{tpu_custom_call.1} parent=0
    #allocation2 [shape = 'u8[65536]{0}', space=vmem, size = 0x10000, scoped, tag = 'input window, operand 5, single buffered']
    #allocation3 [shape = 's32[2]{0}', space=sflag, size = 0x8, scoped, tag = 'scoped memory for tpu_custom_call.1']
    #allocation4 [shape = 's32[2]{0}', space=sflag, size = 0x8, scoped, tag = 'scoped memory for tpu_custom_call.1']
    #allocation5 [shape = 'u8[131072]{0}', space=vmem, size = 0x20000, scoped, tag = 'output window, operand 0']
    %12 = vsyncpa [#allocation3], 0
    %13 = vsyncpa [#allocation4], 0
    %s14 = scalar_lea.sflag [#allocation4], 1
    %15 = vsyncpa %s14, 0
    loop: start=0, step=1, limit=4
    $region2: #{tpu_custom_call.1} parent=1 // loop_pre_header
      _
    $region3: #{tpu_custom_call.1} parent=1 // loop_header
      %s17 = sphi 0, %s21
      %p18 = scmp.ge.s32.totalorder %s17, 4
      %s27 = sphi 0, %s29
      %s30 = sphi 0, %s27
      %s31 = sphi 0, %s30
      %s47 = sphi 0, %s31
      %s51 = sphi 0, %s51
      %s53 = sphi 0, %s51
      %s54 = sphi 0, %s53
      %s68 = sphi 0, %s54
      %s72 = sphi 0, %s72
      %s74 = sphi 0, %s72
      %s75 = sphi 0, %s74
      %s89 = sphi 0, %s75
      %s93 = sphi 0, %s93
      %s95 = sphi 0, %s93
      %s96 = sphi 0, %s95
      %s110 = sphi 0, %s96
      %s114 = sphi 0, %s114
      %s116 = sphi 0, %s114
      %s117 = sphi 0, %s116
      %s131 = sphi 0, %s117
      %s135 = sphi 0, %s135
      %s137 = sphi 0, %s135
      %s138 = sphi 0, %s137
      %s152 = sphi 0, %s138
      %s156 = sphi 0, %s156
      %s158 = sphi 0, %s156
      %s159 = sphi 0, %s158
      %s173 = sphi 0, %s159
      %s179 = sphi 0, %s181
      %s182 = sphi 0, %s179
      %s183 = sphi 0, %s182
      %s199 = sphi 0, %s183
    $region4: #{tpu_custom_call.1} parent=1 // loop_header_branch
      %20 = sbr.rel (%p18) target = $region8
    $region5: #{tpu_custom_call.1} parent=1 // loop_body
      %s22 = ssub.s32 %s17, 1
      %s23 = ssub.s32 %s17, 2
      %s24 = sadd.s32 %s17, 1
      %s25 = ssub.s32 %s17, %s24
      %p26 = scmp.eq.s32.totalorder %s25, 0
      %s28 = sadd.s32 %s27, 1
      %s29 = scalar_select %p26, %s27, %s28
      %p32 = pneg %p26
      %p33 = scmp.eq.s32.totalorder %s17, 1
      %p34 = por %p32, %p33
      %p35 = scmp.ne.s32.totalorder %s27, %s30
      %p36 = scmp.eq.s32.totalorder %s17, 0
      %p37 = por %p35, %p36
      %p38 = scmp.ne.s32.totalorder %s27, %s30
      %p39 = scmp.eq.s32.totalorder %s22, 1
      %p40 = por %p38, %p39
      %p41 = scmp.ne.s32.totalorder %s30, %s31
      %p42 = scmp.eq.s32.totalorder %s22, 0
      %p43 = por %p41, %p42
      %p44 = scmp.ne.s32.totalorder %s30, %s31
      %p45 = scmp.eq.s32.totalorder %s23, 1
      %p46 = por %p44, %p45
      %p48 = scmp.ne.s32.totalorder %s31, %s47
      %p49 = scmp.eq.s32.totalorder %s23, 0
      %p50 = por %p48, %p49
      %s52 = sadd.s32 %s51, 1
      %p55 = scmp.eq.s32.totalorder %s17, 1
      %p56 = scmp.ne.s32.totalorder %s51, %s53
      %p57 = scmp.eq.s32.totalorder %s17, 0
      %p58 = por %p56, %p57
      %p59 = scmp.ne.s32.totalorder %s51, %s53
      %p60 = scmp.eq.s32.totalorder %s22, 1
      %p61 = por %p59, %p60
      %p62 = scmp.ne.s32.totalorder %s53, %s54
      %p63 = scmp.eq.s32.totalorder %s22, 0
      %p64 = por %p62, %p63
      %p65 = scmp.ne.s32.totalorder %s53, %s54
      %p66 = scmp.eq.s32.totalorder %s23, 1
      %p67 = por %p65, %p66
      %p69 = scmp.ne.s32.totalorder %s54, %s68
      %p70 = scmp.eq.s32.totalorder %s23, 0
      %p71 = por %p69, %p70
      %s73 = sadd.s32 %s72, 1
      %p76 = scmp.eq.s32.totalorder %s17, 1
      %p77 = scmp.ne.s32.totalorder %s72, %s74
      %p78 = scmp.eq.s32.totalorder %s17, 0
      %p79 = por %p77, %p78
      %p80 = scmp.ne.s32.totalorder %s72, %s74
      %p81 = scmp.eq.s32.totalorder %s22, 1
      %p82 = por %p80, %p81
      %p83 = scmp.ne.s32.totalorder %s74, %s75
      %p84 = scmp.eq.s32.totalorder %s22, 0
      %p85 = por %p83, %p84
      %p86 = scmp.ne.s32.totalorder %s74, %s75
      %p87 = scmp.eq.s32.totalorder %s23, 1
      %p88 = por %p86, %p87
      %p90 = scmp.ne.s32.totalorder %s75, %s89
      %p91 = scmp.eq.s32.totalorder %s23, 0
      %p92 = por %p90, %p91
      %s94 = sadd.s32 %s93, 1
      %p97 = scmp.eq.s32.totalorder %s17, 1
      %p98 = scmp.ne.s32.totalorder %s93, %s95
      %p99 = scmp.eq.s32.totalorder %s17, 0
      %p100 = por %p98, %p99
      %p101 = scmp.ne.s32.totalorder %s93, %s95
      %p102 = scmp.eq.s32.totalorder %s22, 1
      %p103 = por %p101, %p102
      %p104 = scmp.ne.s32.totalorder %s95, %s96
      %p105 = scmp.eq.s32.totalorder %s22, 0
      %p106 = por %p104, %p105
      %p107 = scmp.ne.s32.totalorder %s95, %s96
      %p108 = scmp.eq.s32.totalorder %s23, 1
      %p109 = por %p107, %p108
      %p111 = scmp.ne.s32.totalorder %s96, %s110
      %p112 = scmp.eq.s32.totalorder %s23, 0
      %p113 = por %p111, %p112
      %s115 = sadd.s32 %s114, 1
      %p118 = scmp.eq.s32.totalorder %s17, 1
      %p119 = scmp.ne.s32.totalorder %s114, %s116
      %p120 = scmp.eq.s32.totalorder %s17, 0
      %p121 = por %p119, %p120
      %p122 = scmp.ne.s32.totalorder %s114, %s116
      %p123 = scmp.eq.s32.totalorder %s22, 1
      %p124 = por %p122, %p123
      %p125 = scmp.ne.s32.totalorder %s116, %s117
      %p126 = scmp.eq.s32.totalorder %s22, 0
      %p127 = por %p125, %p126
      %p128 = scmp.ne.s32.totalorder %s116, %s117
      %p129 = scmp.eq.s32.totalorder %s23, 1
      %p130 = por %p128, %p129
      %p132 = scmp.ne.s32.totalorder %s117, %s131
      %p133 = scmp.eq.s32.totalorder %s23, 0
      %p134 = por %p132, %p133
      %s136 = sadd.s32 %s135, 1
      %p139 = scmp.eq.s32.totalorder %s17, 1
      %p140 = scmp.ne.s32.totalorder %s135, %s137
      %p141 = scmp.eq.s32.totalorder %s17, 0
      %p142 = por %p140, %p141
      %p143 = scmp.ne.s32.totalorder %s135, %s137
      %p144 = scmp.eq.s32.totalorder %s22, 1
      %p145 = por %p143, %p144
      %p146 = scmp.ne.s32.totalorder %s137, %s138
      %p147 = scmp.eq.s32.totalorder %s22, 0
      %p148 = por %p146, %p147
      %p149 = scmp.ne.s32.totalorder %s137, %s138
      %p150 = scmp.eq.s32.totalorder %s23, 1
      %p151 = por %p149, %p150
      %p153 = scmp.ne.s32.totalorder %s138, %s152
      %p154 = scmp.eq.s32.totalorder %s23, 0
      %p155 = por %p153, %p154
      %s157 = sadd.s32 %s156, 1
      %p160 = scmp.eq.s32.totalorder %s17, 1
      %p161 = scmp.ne.s32.totalorder %s156, %s158
      %p162 = scmp.eq.s32.totalorder %s17, 0
      %p163 = por %p161, %p162
      %p164 = scmp.ne.s32.totalorder %s156, %s158
      %p165 = scmp.eq.s32.totalorder %s22, 1
      %p166 = por %p164, %p165
      %p167 = scmp.ne.s32.totalorder %s158, %s159
      %p168 = scmp.eq.s32.totalorder %s22, 0
      %p169 = por %p167, %p168
      %p170 = scmp.ne.s32.totalorder %s158, %s159
      %p171 = scmp.eq.s32.totalorder %s23, 1
      %p172 = por %p170, %p171
      %p174 = scmp.ne.s32.totalorder %s159, %s173
      %p175 = scmp.eq.s32.totalorder %s23, 0
      %p176 = por %p174, %p175
      %s177 = ssub.s32 %s17, %s24
      %p178 = scmp.eq.s32.totalorder %s177, 0
      %s180 = sadd.s32 %s179, 1
      %s181 = scalar_select %p178, %s179, %s180
      %p184 = pneg %p178
      %p185 = scmp.eq.s32.totalorder %s17, 1
      %p186 = por %p184, %p185
      %p187 = scmp.ne.s32.totalorder %s179, %s182
      %p188 = scmp.eq.s32.totalorder %s17, 0
      %p189 = por %p187, %p188
      %p190 = scmp.ne.s32.totalorder %s179, %s182
      %p191 = scmp.eq.s32.totalorder %s22, 1
      %p192 = por %p190, %p191
      %p193 = scmp.ne.s32.totalorder %s182, %s183
      %p194 = scmp.eq.s32.totalorder %s22, 0
      %p195 = por %p193, %p194
      %p196 = scmp.ne.s32.totalorder %s182, %s183
      %p197 = scmp.eq.s32.totalorder %s23, 1
      %p198 = por %p196, %p197
      %p200 = scmp.ne.s32.totalorder %s183, %s199
      %p201 = scmp.eq.s32.totalorder %s23, 0
      %p202 = por %p200, %p201
      %p203 = scmp.le.s32.totalorder 1, %s17
      %p204 = scmp.lt.s32.totalorder %s17, 3
      %p205 = pnand %p203, %p204
      %p206 = pneg %p205
      // Predicated region
      $region9: #{tpu_custom_call.1} parent=5 // pred_check
        _
      $region10: #{tpu_custom_call.1} parent=5 // pred_check_branch
        %208 = sbr.rel (%p205) target = $region12
      $region11: #{tpu_custom_call.1} parent=5 // pred_region
        %s209 = ssub.s32 %s17, 1
        // Predicated region
        $region13: #{tpu_custom_call.1} parent=11 // pred_check
          %p210 = pneg %p64
        $region14: #{tpu_custom_call.1} parent=11 // pred_check_branch
          %212 = sbr.rel (%p210) target = $region16
        $region15: #{tpu_custom_call.1} parent=11 // pred_region
          _
        $region16: #{tpu_custom_call.1} parent=11 // pred_fallthru
          _
        // Predicated region
        $region17: #{tpu_custom_call.1} parent=11 // pred_check
          %p213 = pneg %p85
        $region18: #{tpu_custom_call.1} parent=11 // pred_check_branch
          %215 = sbr.rel (%p213) target = $region20
        $region19: #{tpu_custom_call.1} parent=11 // pred_region
          _
        $region20: #{tpu_custom_call.1} parent=11 // pred_fallthru
          _
        // Predicated region
        $region21: #{tpu_custom_call.1} parent=11 // pred_check
          %p216 = pneg %p106
        $region22: #{tpu_custom_call.1} parent=11 // pred_check_branch
          %218 = sbr.rel (%p216) target = $region24
        $region23: #{tpu_custom_call.1} parent=11 // pred_region
          _
        $region24: #{tpu_custom_call.1} parent=11 // pred_fallthru
          _
        // Predicated region
        $region25: #{tpu_custom_call.1} parent=11 // pred_check
          %p219 = pneg %p127
        $region26: #{tpu_custom_call.1} parent=11 // pred_check_branch
          %221 = sbr.rel (%p219) target = $region28
        $region27: #{tpu_custom_call.1} parent=11 // pred_region
          _
        $region28: #{tpu_custom_call.1} parent=11 // pred_fallthru
          _
        // Predicated region
        $region29: #{tpu_custom_call.1} parent=11 // pred_check
          %p222 = pneg %p148
        $region30: #{tpu_custom_call.1} parent=11 // pred_check_branch
          %224 = sbr.rel (%p222) target = $region32
        $region31: #{tpu_custom_call.1} parent=11 // pred_region
          %s226 = ssub.s32 2048, 2048
          %227 = vsyncadd [#allocation3], %s226
          %s228 = sshll.u32 [#allocation2], 4
          %s229 = int_to_ptr.vmem [resolvable:$true] %s228
          %234 = dma.hbm_to_vmem [thread:$0]  %s5, 2048, %s229, [#allocation3], 128, 128, 8
        $region32: #{tpu_custom_call.1} parent=11 // pred_fallthru
          _
        // Predicated region
        $region33: #{tpu_custom_call.1} parent=11 // pred_check
          %p235 = pneg %p169
        $region34: #{tpu_custom_call.1} parent=11 // pred_check_branch
          %237 = sbr.rel (%p235) target = $region36
        $region35: #{tpu_custom_call.1} parent=11 // pred_region
          _
        $region36: #{tpu_custom_call.1} parent=11 // pred_fallthru
          _
      $region12: #{tpu_custom_call.1} parent=5 // pred_fallthru
        _
      %p238 = scmp.lt.s32.totalorder %s17, 2
      // Predicated region
      $region37: #{tpu_custom_call.1} parent=5 // pred_check
        %p239 = pneg %p238
      $region38: #{tpu_custom_call.1} parent=5 // pred_check_branch
        %241 = sbr.rel (%p239) target = $region40
      $region39: #{tpu_custom_call.1} parent=5 // pred_region
        // Predicated region
        $region41: #{tpu_custom_call.1} parent=39 // pred_check
          %p242 = pneg %p37
        $region42: #{tpu_custom_call.1} parent=39 // pred_check_branch
          %244 = sbr.rel (%p242) target = $region44
        $region43: #{tpu_custom_call.1} parent=39 // pred_region
          %s245 = smul.u32 16, %s17
          %p246 = scmp.lt.s32.totalorder %s245, 31
          %s247 = scalar_select %p246, %s245, 31
          %s248 = smul.addr %s247, 8
          %s249 = scalar_lea.vmem %s0, %s248
          %s250 = smul.u32 16, %s17
        $region44: #{tpu_custom_call.1} parent=39 // pred_fallthru
          _
      $region40: #{tpu_custom_call.1} parent=5 // pred_fallthru
        _
      %p251 = scmp.le.s32.totalorder 1, %s17
      %p252 = scmp.lt.s32.totalorder %s17, 3
      %p253 = pnand %p251, %p252
      %p254 = pneg %p253
      // Predicated region
      $region45: #{tpu_custom_call.1} parent=5 // pred_check
        _
      $region46: #{tpu_custom_call.1} parent=5 // pred_check_branch
        %256 = sbr.rel (%p253) target = $region48
      $region47: #{tpu_custom_call.1} parent=5 // pred_region
        %s257 = ssub.s32 %s17, 1
        // Predicated region
        $region49: #{tpu_custom_call.1} parent=47 // pred_check
          %p258 = pneg %p148
        $region50: #{tpu_custom_call.1} parent=47 // pred_check_branch
          %260 = sbr.rel (%p258) target = $region52
        $region51: #{tpu_custom_call.1} parent=47 // pred_region
          %261 = dma.done [#allocation3], 2048
        $region52: #{tpu_custom_call.1} parent=47 // pred_fallthru
          _
        %s262 = smul.u32 16, %s22
        %p263 = scmp.lt.s32.totalorder %s262, 31
        %s264 = scalar_select %p263, %s262, 31
        %s265 = smul.addr %s264, 8
        %s266 = scalar_lea.vmem %s0, %s265
        %p267 = pneg %p43
        %p268 = pneg %p40
        %p269 = pneg %p64
        %p270 = pneg %p61
        %p271 = pneg %p85
        %p272 = pneg %p82
        %p273 = pneg %p106
        %p274 = pneg %p103
        %p275 = pneg %p127
        %p276 = pneg %p124
        %p277 = pneg %p148
        %p278 = pneg %p145
        %p279 = pneg %p169
        %p280 = pneg %p166
        %p281 = pneg %p195
        %p282 = pneg %p192
        %s283 = sand.u32 %s182, 1
        %s284 = scalar_lea.sflag [#allocation4], %s283
        %s285 = sand.u32 %s182, 1
        %s286 = smul.addr %s285, 128
        %s287 = scalar_lea.vmem [#allocation5], %s286
        %s288 = smul.u32 16, %s22
        %p289 = scmp.lt.s32.totalorder %s288, 31
        %s290 = scalar_select %p289, %s288, 31
        %s291 = smul.addr %s290, 8
        %s292 = scalar_lea.vmem %s0, %s291
        %s293 = smul.u32 16, %s22
        %s294 = smul.u32 16, %s22
        %v295 = vld [vmem:[%s292] sm:$0xff]
        %v296 = vld [vmem:[%s292 + $0x8] sm:$0xff]
        %v297 = vld [vmem:[%s292 + $0x10] sm:$0xff]
        %v298 = vld [vmem:[%s292 + $0x18] sm:$0xff]
        %v299 = vld [vmem:[%s292 + $0x20] sm:$0xff]
        %v300 = vld [vmem:[%s292 + $0x28] sm:$0xff]
        %v301 = vld [vmem:[%s292 + $0x30] sm:$0xff]
        %v302 = vld [vmem:[%s292 + $0x38] sm:$0xff]
        %v303 = vld [vmem:[%s292 + $0x40] sm:$0xff]
        %v304 = vld [vmem:[%s292 + $0x48] sm:$0xff]
        %v305 = vld [vmem:[%s292 + $0x50] sm:$0xff]
        %v306 = vld [vmem:[%s292 + $0x58] sm:$0xff]
        %v307 = vld [vmem:[%s292 + $0x60] sm:$0xff]
        %v308 = vld [vmem:[%s292 + $0x68] sm:$0xff]
        %v309 = vld [vmem:[%s292 + $0x70] sm:$0xff]
        %v310 = vld [vmem:[%s292 + $0x78] sm:$0xff]
        %v311 = vld [vmem:[%s1] sm:$0x3]
        %v312 = vld [vmem:[%s2] sm:$0x1]
        %v314 = vlaneseq
        %v315 = vshrl.u32 %v314, 7
        %v316 = vsub.s32 0, %v315
        %v317 = vrot.slane %v312, %v316
        %vm319 = vcmask 15360
        %v321 = vsel %vm319, %v295, 0
        %v324 = vsel %vm319, %v296, 0
        %v327 = vsel %vm319, %v297, 0
        %v330 = vsel %vm319, %v298, 0
        %v333 = vsel %vm319, %v299, 0
        %v336 = vsel %vm319, %v300, 0
        %v339 = vsel %vm319, %v301, 0
        %v342 = vsel %vm319, %v302, 0
        %v345 = vsel %vm319, %v303, 0
        %v348 = vsel %vm319, %v304, 0
        %v351 = vsel %vm319, %v305, 0
        %v354 = vsel %vm319, %v306, 0
        %v357 = vsel %vm319, %v307, 0
        %v360 = vsel %vm319, %v308, 0
        %v363 = vsel %vm319, %v309, 0
        %v366 = vsel %vm319, %v310, 0
        %vm368 = vcmask 1041408
        %v370 = vsel %vm368, %v311, 0
        %372 = vmatprep.subr.mxu0 0.0
        %373 = vmatpush1.msra.mxu0 %v370
        %374 = vmatprep.subr.mxu0 0.0
        %375 = vmatpush1.msra.mxu0 0.0
        %376 = vmatprep.subr.mxu0 0.0
        %377 = vmatpush1.msra.mxu0 0.0
        %378 = vmatprep.subr.mxu0 0.0
        %379 = vmatpush1.msra.mxu0 0.0
        %380 = vmatprep.subr.mxu0 0.0
        %381 = vmatpush1.msra.mxu0 0.0
        %382 = vmatprep.subr.mxu0 0.0
        %383 = vmatpush1.msra.mxu0 0.0
        %384 = vmatprep.subr.mxu0 0.0
        %385 = vmatpush1.msra.mxu0 0.0
        %386 = vmatprep.subr.mxu0 0.0
        %387 = vmatpush1.msra.mxu0 0.0
        %388 = vmatprep.subr.mxu0 0.0
        %389 = vmatpush1.msra.mxu0 0.0
        %390 = vmatprep.subr.mxu0 0.0
        %391 = vmatpush1.msra.mxu0 0.0
        %392 = vmatprep.subr.mxu0 0.0
        %393 = vmatpush1.msra.mxu0 0.0
        %394 = vmatprep.subr.mxu0 0.0
        %395 = vmatpush1.msra.mxu0 0.0
        %396 = vmatprep.subr.mxu0 0.0
        %397 = vmatpush1.msra.mxu0 0.0
        %398 = vmatprep.subr.mxu0 0.0
        %399 = vmatpush1.msra.mxu0 0.0
        %400 = vmatprep.subr.mxu0 0.0
        %401 = vmatpush1.msra.mxu0 0.0
        %402 = vmatprep.subr.mxu0 0.0
        %403 = vmatpush1.msra.mxu0 0.0
        %404 = vmatprep.subr.mxu0 0.0
        %405 = vmatpush1.msra.mxu0 0.0
        %406 = vmatprep.subr.mxu0 0.0
        %407 = vmatpush1.msra.mxu0 0.0
        %408 = vmatprep.subr.mxu0 0.0
        %409 = vmatpush1.msra.mxu0 0.0
        %410 = vmatprep.subr.mxu0 0.0
        %411 = vmatpush1.msra.mxu0 0.0
        %412 = vmatprep.subr.mxu0 0.0
        %413 = vmatpush1.msra.mxu0 0.0
        %414 = vmatprep.subr.mxu0 0.0
        %415 = vmatpush1.msra.mxu0 0.0
        %416 = vmatprep.subr.mxu0 0.0
        %417 = vmatpush1.msra.mxu0 0.0
        %418 = vmatprep.subr.mxu0 0.0
        %419 = vmatpush1.msra.mxu0 0.0
        %420 = vmatprep.subr.mxu0 0.0
        %421 = vmatpush1.msra.mxu0 0.0
        %422 = vmatprep.subr.mxu0 0.0
        %423 = vmatpush1.msra.mxu0 0.0
        %424 = vmatprep.subr.mxu0 0.0
        %425 = vmatpush1.msra.mxu0 0.0
        %426 = vmatprep.subr.mxu0 0.0
        %427 = vmatpush1.msra.mxu0 0.0
        %428 = vmatprep.subr.mxu0 0.0
        %429 = vmatpush1.msra.mxu0 0.0
        %430 = vmatprep.subr.mxu0 0.0
        %431 = vmatpush1.msra.mxu0 0.0
        %432 = vmatprep.subr.mxu0 0.0
        %433 = vmatpush1.msra.mxu0 0.0
        %434 = vmatprep.subr.mxu0 0.0
        %435 = vmatpush1.msra.mxu0 0.0
        %436 = vmatprep.mubr.f32.mxu0 0.0
        %437 = vmatmul.mubr.f32.gmra.mrb[0].mxu0 %v321
        %v438 = vpop.f32.mrb[0].mxu0
        %v439 = vadd.f32 %v317, %v438
        %v440 = vpop.f32.mrb[0].mxu0
        %441 = vmatprep.mubr.f32.mxu0 0.0
        %442 = vmatmul.mubr.f32.gmra.mrb[0].mxu0 %v324
        %v443 = vpop.f32.mrb[0].mxu0
        %v444 = vadd.f32 %v317, %v443
        %v445 = vpop.f32.mrb[0].mxu0
        %446 = vmatprep.mubr.f32.mxu0 0.0
        %447 = vmatmul.mubr.f32.gmra.mrb[0].mxu0 %v327
        %v448 = vpop.f32.mrb[0].mxu0
        %v449 = vadd.f32 %v317, %v448
        %v450 = vpop.f32.mrb[0].mxu0
        %451 = vmatprep.mubr.f32.mxu0 0.0
        %452 = vmatmul.mubr.f32.gmra.mrb[0].mxu0 %v330
        %v453 = vpop.f32.mrb[0].mxu0
        %v454 = vadd.f32 %v317, %v453
        %v455 = vpop.f32.mrb[0].mxu0
        %456 = vmatprep.mubr.f32.mxu0 0.0
        %457 = vmatmul.mubr.f32.gmra.mrb[0].mxu0 %v333
        %v458 = vpop.f32.mrb[0].mxu0
        %v459 = vadd.f32 %v317, %v458
        %v460 = vpop.f32.mrb[0].mxu0
        %461 = vmatprep.mubr.f32.mxu0 0.0
        %462 = vmatmul.mubr.f32.gmra.mrb[0].mxu0 %v336
        %v463 = vpop.f32.mrb[0].mxu0
        %v464 = vadd.f32 %v317, %v463
        %v465 = vpop.f32.mrb[0].mxu0
        %466 = vmatprep.mubr.f32.mxu0 0.0
        %467 = vmatmul.mubr.f32.gmra.mrb[0].mxu0 %v339
        %v468 = vpop.f32.mrb[0].mxu0
        %v469 = vadd.f32 %v317, %v468
        %v470 = vpop.f32.mrb[0].mxu0
        %471 = vmatprep.mubr.f32.mxu0 0.0
        %472 = vmatmul.mubr.f32.gmra.mrb[0].mxu0 %v342
        %v473 = vpop.f32.mrb[0].mxu0
        %v474 = vadd.f32 %v317, %v473
        %v475 = vpop.f32.mrb[0].mxu0
        %476 = vmatprep.mubr.f32.mxu0 0.0
        %477 = vmatmul.mubr.f32.gmra.mrb[0].mxu0 %v345
        %v478 = vpop.f32.mrb[0].mxu0
        %v479 = vadd.f32 %v317, %v478
        %v480 = vpop.f32.mrb[0].mxu0
        %481 = vmatprep.mubr.f32.mxu0 0.0
        %482 = vmatmul.mubr.f32.gmra.mrb[0].mxu0 %v348
        %v483 = vpop.f32.mrb[0].mxu0
        %v484 = vadd.f32 %v317, %v483
        %v485 = vpop.f32.mrb[0].mxu0
        %486 = vmatprep.mubr.f32.mxu0 0.0
        %487 = vmatmul.mubr.f32.gmra.mrb[0].mxu0 %v351
        %v488 = vpop.f32.mrb[0].mxu0
        %v489 = vadd.f32 %v317, %v488
        %v490 = vpop.f32.mrb[0].mxu0
        %491 = vmatprep.mubr.f32.mxu0 0.0
        %492 = vmatmul.mubr.f32.gmra.mrb[0].mxu0 %v354
        %v493 = vpop.f32.mrb[0].mxu0
        %v494 = vadd.f32 %v317, %v493
        %v495 = vpop.f32.mrb[0].mxu0
        %496 = vmatprep.mubr.f32.mxu0 0.0
        %497 = vmatmul.mubr.f32.gmra.mrb[0].mxu0 %v357
        %v498 = vpop.f32.mrb[0].mxu0
        %v499 = vadd.f32 %v317, %v498
        %v500 = vpop.f32.mrb[0].mxu0
        %501 = vmatprep.mubr.f32.mxu0 0.0
        %502 = vmatmul.mubr.f32.gmra.mrb[0].mxu0 %v360
        %v503 = vpop.f32.mrb[0].mxu0
        %v504 = vadd.f32 %v317, %v503
        %v505 = vpop.f32.mrb[0].mxu0
        %506 = vmatprep.mubr.f32.mxu0 0.0
        %507 = vmatmul.mubr.f32.gmra.mrb[0].mxu0 %v363
        %v508 = vpop.f32.mrb[0].mxu0
        %v509 = vadd.f32 %v317, %v508
        %v510 = vpop.f32.mrb[0].mxu0
        %511 = vmatprep.mubr.f32.mxu0 0.0
        %512 = vmatmul.mubr.f32.gmra.mrb[0].mxu0 %v366
        %v513 = vpop.f32.mrb[0].mxu0
        %v514 = vadd.f32 %v317, %v513
        %v515 = vpop.f32.mrb[0].mxu0
        %516 = vdwg.mxu0
        %v517 = vtanh.pop %v439
        %v518 = vtanh.pop %v444
        %v519 = vtanh.pop %v449
        %v520 = vtanh.pop %v454
        %v521 = vtanh.pop %v459
        %v522 = vtanh.pop %v464
        %v523 = vtanh.pop %v469
        %v524 = vtanh.pop %v474
        %v525 = vtanh.pop %v479
        %v526 = vtanh.pop %v484
        %v527 = vtanh.pop %v489
        %v528 = vtanh.pop %v494
        %v529 = vtanh.pop %v499
        %v530 = vtanh.pop %v504
        %v531 = vtanh.pop %v509
        %v532 = vtanh.pop %v514
        %v533 = vld [vmem:[%s3] sm:$0xff]
        %v534 = vld [vmem:[%s3 + $0x8] sm:$0xff]
        %v535 = vld [vmem:[%s3 + $0x10] sm:$0xff]
        %v536 = vld [vmem:[%s3 + $0x18] sm:$0xff]
        %v537 = vld [vmem:[%s3 + $0x20] sm:$0xff]
        %v538 = vld [vmem:[%s3 + $0x28] sm:$0xff]
        %v539 = vld [vmem:[%s3 + $0x30] sm:$0xff]
        %v540 = vld [vmem:[%s3 + $0x38] sm:$0xff]
        %v541 = vld [vmem:[%s3 + $0x40] sm:$0xff]
        %v542 = vld [vmem:[%s3 + $0x48] sm:$0xff]
        %v543 = vld [vmem:[%s3 + $0x50] sm:$0xff]
        %v544 = vld [vmem:[%s3 + $0x58] sm:$0xff]
        %v545 = vld [vmem:[%s3 + $0x60] sm:$0xff]
        %v546 = vld [vmem:[%s3 + $0x68] sm:$0xff]
        %v547 = vld [vmem:[%s3 + $0x70] sm:$0xff]
        %v548 = vld [vmem:[%s3 + $0x78] sm:$0xff]
        %v549 = vld [vmem:[%s4] sm:$0x1]
        %v551 = vlaneseq
        %v552 = vshrl.u32 %v551, 7
        %v553 = vsub.s32 0, %v552
        %v554 = vrot.slane %v549, %v553
        %556 = vmatprep.subr.mxu0 0.0
        %557 = vmatpush1.msra.mxu0 %v533
        %558 = vmatprep.subr.mxu0 0.0
        %559 = vmatpush1.msra.mxu0 %v534
        %560 = vmatprep.subr.mxu0 0.0
        %561 = vmatpush1.msra.mxu0 %v535
        %562 = vmatprep.subr.mxu0 0.0
        %563 = vmatpush1.msra.mxu0 %v536
        %564 = vmatprep.subr.mxu0 0.0
        %565 = vmatpush1.msra.mxu0 %v537
        %566 = vmatprep.subr.mxu0 0.0
        %567 = vmatpush1.msra.mxu0 %v538
        %568 = vmatprep.subr.mxu0 0.0
        %569 = vmatpush1.msra.mxu0 %v539
        %570 = vmatprep.subr.mxu0 0.0
        %571 = vmatpush1.msra.mxu0 %v540
        %572 = vmatprep.subr.mxu0 0.0
        %573 = vmatpush1.msra.mxu0 %v541
        %574 = vmatprep.subr.mxu0 0.0
        %575 = vmatpush1.msra.mxu0 %v542
        %576 = vmatprep.subr.mxu0 0.0
        %577 = vmatpush1.msra.mxu0 %v543
        %578 = vmatprep.subr.mxu0 0.0
        %579 = vmatpush1.msra.mxu0 %v544
        %580 = vmatprep.subr.mxu0 0.0
        %581 = vmatpush1.msra.mxu0 %v545
        %582 = vmatprep.subr.mxu0 0.0
        %583 = vmatpush1.msra.mxu0 %v546
        %584 = vmatprep.subr.mxu0 0.0
        %585 = vmatpush1.msra.mxu0 %v547
        %586 = vmatprep.subr.mxu0 0.0
        %587 = vmatpush1.msra.mxu0 %v548
        %588 = vmatprep.subr.mxu0 0.0
        %589 = vmatpush1.msra.mxu0 0.0
        %590 = vmatprep.subr.mxu0 0.0
        %591 = vmatpush1.msra.mxu0 0.0
        %592 = vmatprep.subr.mxu0 0.0
        %593 = vmatpush1.msra.mxu0 0.0
        %594 = vmatprep.subr.mxu0 0.0
        %595 = vmatpush1.msra.mxu0 0.0
        %596 = vmatprep.subr.mxu0 0.0
        %597 = vmatpush1.msra.mxu0 0.0
        %598 = vmatprep.subr.mxu0 0.0
        %599 = vmatpush1.msra.mxu0 0.0
        %600 = vmatprep.subr.mxu0 0.0
        %601 = vmatpush1.msra.mxu0 0.0
        %602 = vmatprep.subr.mxu0 0.0
        %603 = vmatpush1.msra.mxu0 0.0
        %604 = vmatprep.subr.mxu0 0.0
        %605 = vmatpush1.msra.mxu0 0.0
        %606 = vmatprep.subr.mxu0 0.0
        %607 = vmatpush1.msra.mxu0 0.0
        %608 = vmatprep.subr.mxu0 0.0
        %609 = vmatpush1.msra.mxu0 0.0
        %610 = vmatprep.subr.mxu0 0.0
        %611 = vmatpush1.msra.mxu0 0.0
        %612 = vmatprep.subr.mxu0 0.0
        %613 = vmatpush1.msra.mxu0 0.0
        %614 = vmatprep.subr.mxu0 0.0
        %615 = vmatpush1.msra.mxu0 0.0
        %616 = vmatprep.subr.mxu0 0.0
        %617 = vmatpush1.msra.mxu0 0.0
        %618 = vmatprep.subr.mxu0 0.0
        %619 = vmatpush1.msra.mxu0 0.0
        %620 = vmatprep.mubr.f32.mxu0 0.0
        %621 = vmatmul.mubr.f32.gmra.mrb[0].mxu0 %v517
        %v622 = vpop.f32.mrb[0].mxu0
        %v623 = vadd.f32 %v554, %v622
        %v624 = vpop.f32.mrb[0].mxu0
        %625 = vmatprep.mubr.f32.mxu0 0.0
        %626 = vmatmul.mubr.f32.gmra.mrb[0].mxu0 %v518
        %v627 = vpop.f32.mrb[0].mxu0
        %v628 = vadd.f32 %v554, %v627
        %v629 = vpop.f32.mrb[0].mxu0
        %630 = vmatprep.mubr.f32.mxu0 0.0
        %631 = vmatmul.mubr.f32.gmra.mrb[0].mxu0 %v519
        %v632 = vpop.f32.mrb[0].mxu0
        %v633 = vadd.f32 %v554, %v632
        %v634 = vpop.f32.mrb[0].mxu0
        %635 = vmatprep.mubr.f32.mxu0 0.0
        %636 = vmatmul.mubr.f32.gmra.mrb[0].mxu0 %v520
        %v637 = vpop.f32.mrb[0].mxu0
        %v638 = vadd.f32 %v554, %v637
        %v639 = vpop.f32.mrb[0].mxu0
        %640 = vmatprep.mubr.f32.mxu0 0.0
        %641 = vmatmul.mubr.f32.gmra.mrb[0].mxu0 %v521
        %v642 = vpop.f32.mrb[0].mxu0
        %v643 = vadd.f32 %v554, %v642
        %v644 = vpop.f32.mrb[0].mxu0
        %645 = vmatprep.mubr.f32.mxu0 0.0
        %646 = vmatmul.mubr.f32.gmra.mrb[0].mxu0 %v522
        %v647 = vpop.f32.mrb[0].mxu0
        %v648 = vadd.f32 %v554, %v647
        %v649 = vpop.f32.mrb[0].mxu0
        %650 = vmatprep.mubr.f32.mxu0 0.0
        %651 = vmatmul.mubr.f32.gmra.mrb[0].mxu0 %v523
        %v652 = vpop.f32.mrb[0].mxu0
        %v653 = vadd.f32 %v554, %v652
        %v654 = vpop.f32.mrb[0].mxu0
        %655 = vmatprep.mubr.f32.mxu0 0.0
        %656 = vmatmul.mubr.f32.gmra.mrb[0].mxu0 %v524
        %v657 = vpop.f32.mrb[0].mxu0
        %v658 = vadd.f32 %v554, %v657
        %v659 = vpop.f32.mrb[0].mxu0
        %660 = vmatprep.mubr.f32.mxu0 0.0
        %661 = vmatmul.mubr.f32.gmra.mrb[0].mxu0 %v525
        %v662 = vpop.f32.mrb[0].mxu0
        %v663 = vadd.f32 %v554, %v662
        %v664 = vpop.f32.mrb[0].mxu0
        %665 = vmatprep.mubr.f32.mxu0 0.0
        %666 = vmatmul.mubr.f32.gmra.mrb[0].mxu0 %v526
        %v667 = vpop.f32.mrb[0].mxu0
        %v668 = vadd.f32 %v554, %v667
        %v669 = vpop.f32.mrb[0].mxu0
        %670 = vmatprep.mubr.f32.mxu0 0.0
        %671 = vmatmul.mubr.f32.gmra.mrb[0].mxu0 %v527
        %v672 = vpop.f32.mrb[0].mxu0
        %v673 = vadd.f32 %v554, %v672
        %v674 = vpop.f32.mrb[0].mxu0
        %675 = vmatprep.mubr.f32.mxu0 0.0
        %676 = vmatmul.mubr.f32.gmra.mrb[0].mxu0 %v528
        %v677 = vpop.f32.mrb[0].mxu0
        %v678 = vadd.f32 %v554, %v677
        %v679 = vpop.f32.mrb[0].mxu0
        %680 = vmatprep.mubr.f32.mxu0 0.0
        %681 = vmatmul.mubr.f32.gmra.mrb[0].mxu0 %v529
        %v682 = vpop.f32.mrb[0].mxu0
        %v683 = vadd.f32 %v554, %v682
        %v684 = vpop.f32.mrb[0].mxu0
        %685 = vmatprep.mubr.f32.mxu0 0.0
        %686 = vmatmul.mubr.f32.gmra.mrb[0].mxu0 %v530
        %v687 = vpop.f32.mrb[0].mxu0
        %v688 = vadd.f32 %v554, %v687
        %v689 = vpop.f32.mrb[0].mxu0
        %690 = vmatprep.mubr.f32.mxu0 0.0
        %691 = vmatmul.mubr.f32.gmra.mrb[0].mxu0 %v531
        %v692 = vpop.f32.mrb[0].mxu0
        %v693 = vadd.f32 %v554, %v692
        %v694 = vpop.f32.mrb[0].mxu0
        %695 = vmatprep.mubr.f32.mxu0 0.0
        %696 = vmatmul.mubr.f32.gmra.mrb[0].mxu0 %v532
        %v697 = vpop.f32.mrb[0].mxu0
        %v698 = vadd.f32 %v554, %v697
        %v699 = vpop.f32.mrb[0].mxu0
        %700 = vdwg.mxu0
        %v701 = vtanh.pop %v623
        %v702 = vtanh.pop %v628
        %v703 = vtanh.pop %v633
        %v704 = vtanh.pop %v638
        %v705 = vtanh.pop %v643
        %v706 = vtanh.pop %v648
        %v707 = vtanh.pop %v653
        %v708 = vtanh.pop %v658
        %v709 = vtanh.pop %v663
        %v710 = vtanh.pop %v668
        %v711 = vtanh.pop %v673
        %v712 = vtanh.pop %v678
        %v713 = vtanh.pop %v683
        %v714 = vtanh.pop %v688
        %v715 = vtanh.pop %v693
        %v716 = vtanh.pop %v698
        %s717 = scalar_lea.vmem %s3, 128
        %v718 = vld [vmem:[%s717] sm:$0xff]
        %v719 = vld [vmem:[%s717 + $0x8] sm:$0xff]
        %v720 = vld [vmem:[%s717 + $0x10] sm:$0xff]
        %v721 = vld [vmem:[%s717 + $0x18] sm:$0xff]
        %v722 = vld [vmem:[%s717 + $0x20] sm:$0xff]
        %v723 = vld [vmem:[%s717 + $0x28] sm:$0xff]
        %v724 = vld [vmem:[%s717 + $0x30] sm:$0xff]
        %v725 = vld [vmem:[%s717 + $0x38] sm:$0xff]
        %v726 = vld [vmem:[%s717 + $0x40] sm:$0xff]
        %v727 = vld [vmem:[%s717 + $0x48] sm:$0xff]
        %v728 = vld [vmem:[%s717 + $0x50] sm:$0xff]
        %v729 = vld [vmem:[%s717 + $0x58] sm:$0xff]
        %v730 = vld [vmem:[%s717 + $0x60] sm:$0xff]
        %v731 = vld [vmem:[%s717 + $0x68] sm:$0xff]
        %v732 = vld [vmem:[%s717 + $0x70] sm:$0xff]
        %v733 = vld [vmem:[%s717 + $0x78] sm:$0xff]
        %s734 = scalar_lea.vmem %s4, 1
        %v735 = vld [vmem:[%s734] sm:$0x1]
        %v737 = vlaneseq
        %v738 = vshrl.u32 %v737, 7
        %v739 = vsub.s32 0, %v738
        %v740 = vrot.slane %v735, %v739
        %742 = vmatprep.subr.mxu0 0.0
        %743 = vmatpush1.msra.mxu0 %v718
        %744 = vmatprep.subr.mxu0 0.0
        %745 = vmatpush1.msra.mxu0 %v719
        %746 = vmatprep.subr.mxu0 0.0
        %747 = vmatpush1.msra.mxu0 %v720
        %748 = vmatprep.subr.mxu0 0.0
        %749 = vmatpush1.msra.mxu0 %v721
        %750 = vmatprep.subr.mxu0 0.0
        %751 = vmatpush1.msra.mxu0 %v722
        %752 = vmatprep.subr.mxu0 0.0
        %753 = vmatpush1.msra.mxu0 %v723
        %754 = vmatprep.subr.mxu0 0.0
        %755 = vmatpush1.msra.mxu0 %v724
        %756 = vmatprep.subr.mxu0 0.0
        %757 = vmatpush1.msra.mxu0 %v725
        %758 = vmatprep.subr.mxu0 0.0
        %759 = vmatpush1.msra.mxu0 %v726
        %760 = vmatprep.subr.mxu0 0.0
        %761 = vmatpush1.msra.mxu0 %v727
        %762 = vmatprep.subr.mxu0 0.0
        %763 = vmatpush1.msra.mxu0 %v728
        %764 = vmatprep.subr.mxu0 0.0
        %765 = vmatpush1.msra.mxu0 %v729
        %766 = vmatprep.subr.mxu0 0.0
        %767 = vmatpush1.msra.mxu0 %v730
        %768 = vmatprep.subr.mxu0 0.0
        %769 = vmatpush1.msra.mxu0 %v731
        %770 = vmatprep.subr.mxu0 0.0
        %771 = vmatpush1.msra.mxu0 %v732
        %772 = vmatprep.subr.mxu0 0.0
        %773 = vmatpush1.msra.mxu0 %v733
        %774 = vmatprep.subr.mxu0 0.0
        %775 = vmatpush1.msra.mxu0 0.0
        %776 = vmatprep.subr.mxu0 0.0
        %777 = vmatpush1.msra.mxu0 0.0
        %778 = vmatprep.subr.mxu0 0.0
        %779 = vmatpush1.msra.mxu0 0.0
        %780 = vmatprep.subr.mxu0 0.0
        %781 = vmatpush1.msra.mxu0 0.0
        %782 = vmatprep.subr.mxu0 0.0
        %783 = vmatpush1.msra.mxu0 0.0
        %784 = vmatprep.subr.mxu0 0.0
        %785 = vmatpush1.msra.mxu0 0.0
        %786 = vmatprep.subr.mxu0 0.0
        %787 = vmatpush1.msra.mxu0 0.0
        %788 = vmatprep.subr.mxu0 0.0
        %789 = vmatpush1.msra.mxu0 0.0
        %790 = vmatprep.subr.mxu0 0.0
        %791 = vmatpush1.msra.mxu0 0.0
        %792 = vmatprep.subr.mxu0 0.0
        %793 = vmatpush1.msra.mxu0 0.0
        %794 = vmatprep.subr.mxu0 0.0
        %795 = vmatpush1.msra.mxu0 0.0
        %796 = vmatprep.subr.mxu0 0.0
        %797 = vmatpush1.msra.mxu0 0.0
        %798 = vmatprep.subr.mxu0 0.0
        %799 = vmatpush1.msra.mxu0 0.0
        %800 = vmatprep.subr.mxu0 0.0
        %801 = vmatpush1.msra.mxu0 0.0
        %802 = vmatprep.subr.mxu0 0.0
        %803 = vmatpush1.msra.mxu0 0.0
        %804 = vmatprep.subr.mxu0 0.0
        %805 = vmatpush1.msra.mxu0 0.0
        %806 = vmatprep.mubr.f32.mxu0 0.0
        %807 = vmatmul.mubr.f32.gmra.mrb[0].mxu0 %v701
        %v808 = vpop.f32.mrb[0].mxu0
        %v809 = vadd.f32 %v740, %v808
        %v810 = vpop.f32.mrb[0].mxu0
        %811 = vmatprep.mubr.f32.mxu0 0.0
        %812 = vmatmul.mubr.f32.gmra.mrb[0].mxu0 %v702
        %v813 = vpop.f32.mrb[0].mxu0
        %v814 = vadd.f32 %v740, %v813
        %v815 = vpop.f32.mrb[0].mxu0
        %816 = vmatprep.mubr.f32.mxu0 0.0
        %817 = vmatmul.mubr.f32.gmra.mrb[0].mxu0 %v703
        %v818 = vpop.f32.mrb[0].mxu0
        %v819 = vadd.f32 %v740, %v818
        %v820 = vpop.f32.mrb[0].mxu0
        %821 = vmatprep.mubr.f32.mxu0 0.0
        %822 = vmatmul.mubr.f32.gmra.mrb[0].mxu0 %v704
        %v823 = vpop.f32.mrb[0].mxu0
        %v824 = vadd.f32 %v740, %v823
        %v825 = vpop.f32.mrb[0].mxu0
        %826 = vmatprep.mubr.f32.mxu0 0.0
        %827 = vmatmul.mubr.f32.gmra.mrb[0].mxu0 %v705
        %v828 = vpop.f32.mrb[0].mxu0
        %v829 = vadd.f32 %v740, %v828
        %v830 = vpop.f32.mrb[0].mxu0
        %831 = vmatprep.mubr.f32.mxu0 0.0
        %832 = vmatmul.mubr.f32.gmra.mrb[0].mxu0 %v706
        %v833 = vpop.f32.mrb[0].mxu0
        %v834 = vadd.f32 %v740, %v833
        %v835 = vpop.f32.mrb[0].mxu0
        %836 = vmatprep.mubr.f32.mxu0 0.0
        %837 = vmatmul.mubr.f32.gmra.mrb[0].mxu0 %v707
        %v838 = vpop.f32.mrb[0].mxu0
        %v839 = vadd.f32 %v740, %v838
        %v840 = vpop.f32.mrb[0].mxu0
        %841 = vmatprep.mubr.f32.mxu0 0.0
        %842 = vmatmul.mubr.f32.gmra.mrb[0].mxu0 %v708
        %v843 = vpop.f32.mrb[0].mxu0
        %v844 = vadd.f32 %v740, %v843
        %v845 = vpop.f32.mrb[0].mxu0
        %846 = vmatprep.mubr.f32.mxu0 0.0
        %847 = vmatmul.mubr.f32.gmra.mrb[0].mxu0 %v709
        %v848 = vpop.f32.mrb[0].mxu0
        %v849 = vadd.f32 %v740, %v848
        %v850 = vpop.f32.mrb[0].mxu0
        %851 = vmatprep.mubr.f32.mxu0 0.0
        %852 = vmatmul.mubr.f32.gmra.mrb[0].mxu0 %v710
        %v853 = vpop.f32.mrb[0].mxu0
        %v854 = vadd.f32 %v740, %v853
        %v855 = vpop.f32.mrb[0].mxu0
        %856 = vmatprep.mubr.f32.mxu0 0.0
        %857 = vmatmul.mubr.f32.gmra.mrb[0].mxu0 %v711
        %v858 = vpop.f32.mrb[0].mxu0
        %v859 = vadd.f32 %v740, %v858
        %v860 = vpop.f32.mrb[0].mxu0
        %861 = vmatprep.mubr.f32.mxu0 0.0
        %862 = vmatmul.mubr.f32.gmra.mrb[0].mxu0 %v712
        %v863 = vpop.f32.mrb[0].mxu0
        %v864 = vadd.f32 %v740, %v863
        %v865 = vpop.f32.mrb[0].mxu0
        %866 = vmatprep.mubr.f32.mxu0 0.0
        %867 = vmatmul.mubr.f32.gmra.mrb[0].mxu0 %v713
        %v868 = vpop.f32.mrb[0].mxu0
        %v869 = vadd.f32 %v740, %v868
        %v870 = vpop.f32.mrb[0].mxu0
        %871 = vmatprep.mubr.f32.mxu0 0.0
        %872 = vmatmul.mubr.f32.gmra.mrb[0].mxu0 %v714
        %v873 = vpop.f32.mrb[0].mxu0
        %v874 = vadd.f32 %v740, %v873
        %v875 = vpop.f32.mrb[0].mxu0
        %876 = vmatprep.mubr.f32.mxu0 0.0
        %877 = vmatmul.mubr.f32.gmra.mrb[0].mxu0 %v715
        %v878 = vpop.f32.mrb[0].mxu0
        %v879 = vadd.f32 %v740, %v878
        %v880 = vpop.f32.mrb[0].mxu0
        %881 = vmatprep.mubr.f32.mxu0 0.0
        %882 = vmatmul.mubr.f32.gmra.mrb[0].mxu0 %v716
        %v883 = vpop.f32.mrb[0].mxu0
        %v884 = vadd.f32 %v740, %v883
        %v885 = vpop.f32.mrb[0].mxu0
        %886 = vdwg.mxu0
        %v887 = vtanh.pop %v809
        %v888 = vtanh.pop %v814
        %v889 = vtanh.pop %v819
        %v890 = vtanh.pop %v824
        %v891 = vtanh.pop %v829
        %v892 = vtanh.pop %v834
        %v893 = vtanh.pop %v839
        %v894 = vtanh.pop %v844
        %v895 = vtanh.pop %v849
        %v896 = vtanh.pop %v854
        %v897 = vtanh.pop %v859
        %v898 = vtanh.pop %v864
        %v899 = vtanh.pop %v869
        %v900 = vtanh.pop %v874
        %v901 = vtanh.pop %v879
        %v902 = vtanh.pop %v884
        %v903 = vld [vmem:[#allocation2] sm:$0xff]
        %v904 = vld [vmem:[#allocation2 + $0x8] sm:$0xff]
        %v905 = vld [vmem:[#allocation2 + $0x10] sm:$0xff]
        %v906 = vld [vmem:[#allocation2 + $0x18] sm:$0xff]
        %v907 = vld [vmem:[#allocation2 + $0x20] sm:$0xff]
        %v908 = vld [vmem:[#allocation2 + $0x28] sm:$0xff]
        %v909 = vld [vmem:[#allocation2 + $0x30] sm:$0xff]
        %v910 = vld [vmem:[#allocation2 + $0x38] sm:$0xff]
        %v911 = vld [vmem:[#allocation2 + $0x40] sm:$0xff]
        %v912 = vld [vmem:[#allocation2 + $0x48] sm:$0xff]
        %v913 = vld [vmem:[#allocation2 + $0x50] sm:$0xff]
        %v914 = vld [vmem:[#allocation2 + $0x58] sm:$0xff]
        %v915 = vld [vmem:[#allocation2 + $0x60] sm:$0xff]
        %v916 = vld [vmem:[#allocation2 + $0x68] sm:$0xff]
        %v917 = vld [vmem:[#allocation2 + $0x70] sm:$0xff]
        %v918 = vld [vmem:[#allocation2 + $0x78] sm:$0xff]
        %v919 = vld [vmem:[%s6] sm:$0x1]
        %v921 = vlaneseq
        %v922 = vshrl.u32 %v921, 7
        %v923 = vsub.s32 0, %v922
        %v924 = vrot.slane %v919, %v923
        %926 = vmatprep.subr.mxu0 0.0
        %927 = vmatpush1.msra.mxu0 %v903
        %928 = vmatprep.subr.mxu0 0.0
        %929 = vmatpush1.msra.mxu0 %v904
        %930 = vmatprep.subr.mxu0 0.0
        %931 = vmatpush1.msra.mxu0 %v905
        %932 = vmatprep.subr.mxu0 0.0
        %933 = vmatpush1.msra.mxu0 %v906
        %934 = vmatprep.subr.mxu0 0.0
        %935 = vmatpush1.msra.mxu0 %v907
        %936 = vmatprep.subr.mxu0 0.0
        %937 = vmatpush1.msra.mxu0 %v908
        %938 = vmatprep.subr.mxu0 0.0
        %939 = vmatpush1.msra.mxu0 %v909
        %940 = vmatprep.subr.mxu0 0.0
        %941 = vmatpush1.msra.mxu0 %v910
        %942 = vmatprep.subr.mxu0 0.0
        %943 = vmatpush1.msra.mxu0 %v911
        %944 = vmatprep.subr.mxu0 0.0
        %945 = vmatpush1.msra.mxu0 %v912
        %946 = vmatprep.subr.mxu0 0.0
        %947 = vmatpush1.msra.mxu0 %v913
        %948 = vmatprep.subr.mxu0 0.0
        %949 = vmatpush1.msra.mxu0 %v914
        %950 = vmatprep.subr.mxu0 0.0
        %951 = vmatpush1.msra.mxu0 %v915
        %952 = vmatprep.subr.mxu0 0.0
        %953 = vmatpush1.msra.mxu0 %v916
        %954 = vmatprep.subr.mxu0 0.0
        %955 = vmatpush1.msra.mxu0 %v917
        %956 = vmatprep.subr.mxu0 0.0
        %957 = vmatpush1.msra.mxu0 %v918
        %958 = vmatprep.subr.mxu0 0.0
        %959 = vmatpush1.msra.mxu0 0.0
        %960 = vmatprep.subr.mxu0 0.0
        %961 = vmatpush1.msra.mxu0 0.0
        %962 = vmatprep.subr.mxu0 0.0
        %963 = vmatpush1.msra.mxu0 0.0
        %964 = vmatprep.subr.mxu0 0.0
        %965 = vmatpush1.msra.mxu0 0.0
        %966 = vmatprep.subr.mxu0 0.0
        %967 = vmatpush1.msra.mxu0 0.0
        %968 = vmatprep.subr.mxu0 0.0
        %969 = vmatpush1.msra.mxu0 0.0
        %970 = vmatprep.subr.mxu0 0.0
        %971 = vmatpush1.msra.mxu0 0.0
        %972 = vmatprep.subr.mxu0 0.0
        %973 = vmatpush1.msra.mxu0 0.0
        %974 = vmatprep.subr.mxu0 0.0
        %975 = vmatpush1.msra.mxu0 0.0
        %976 = vmatprep.subr.mxu0 0.0
        %977 = vmatpush1.msra.mxu0 0.0
        %978 = vmatprep.subr.mxu0 0.0
        %979 = vmatpush1.msra.mxu0 0.0
        %980 = vmatprep.subr.mxu0 0.0
        %981 = vmatpush1.msra.mxu0 0.0
        %982 = vmatprep.subr.mxu0 0.0
        %983 = vmatpush1.msra.mxu0 0.0
        %984 = vmatprep.subr.mxu0 0.0
        %985 = vmatpush1.msra.mxu0 0.0
        %986 = vmatprep.subr.mxu0 0.0
        %987 = vmatpush1.msra.mxu0 0.0
        %988 = vmatprep.subr.mxu0 0.0
        %989 = vmatpush1.msra.mxu0 0.0
        %990 = vmatprep.mubr.f32.mxu0 0.0
        %991 = vmatmul.mubr.f32.gmra.mrb[0].mxu0 %v887
        %v992 = vpop.f32.mrb[0].mxu0
        %v993 = vadd.f32 %v924, %v992
        %v994 = vpop.f32.mrb[0].mxu0
        %995 = vmatprep.mubr.f32.mxu0 0.0
        %996 = vmatmul.mubr.f32.gmra.mrb[0].mxu0 %v888
        %v997 = vpop.f32.mrb[0].mxu0
        %v998 = vadd.f32 %v924, %v997
        %v999 = vpop.f32.mrb[0].mxu0
        %1000 = vmatprep.mubr.f32.mxu0 0.0
        %1001 = vmatmul.mubr.f32.gmra.mrb[0].mxu0 %v889
        %v1002 = vpop.f32.mrb[0].mxu0
        %v1003 = vadd.f32 %v924, %v1002
        %v1004 = vpop.f32.mrb[0].mxu0
        %1005 = vmatprep.mubr.f32.mxu0 0.0
        %1006 = vmatmul.mubr.f32.gmra.mrb[0].mxu0 %v890
        %v1007 = vpop.f32.mrb[0].mxu0
        %v1008 = vadd.f32 %v924, %v1007
        %v1009 = vpop.f32.mrb[0].mxu0
        %1010 = vmatprep.mubr.f32.mxu0 0.0
        %1011 = vmatmul.mubr.f32.gmra.mrb[0].mxu0 %v891
        %v1012 = vpop.f32.mrb[0].mxu0
        %v1013 = vadd.f32 %v924, %v1012
        %v1014 = vpop.f32.mrb[0].mxu0
        %1015 = vmatprep.mubr.f32.mxu0 0.0
        %1016 = vmatmul.mubr.f32.gmra.mrb[0].mxu0 %v892
        %v1017 = vpop.f32.mrb[0].mxu0
        %v1018 = vadd.f32 %v924, %v1017
        %v1019 = vpop.f32.mrb[0].mxu0
        %1020 = vmatprep.mubr.f32.mxu0 0.0
        %1021 = vmatmul.mubr.f32.gmra.mrb[0].mxu0 %v893
        %v1022 = vpop.f32.mrb[0].mxu0
        %v1023 = vadd.f32 %v924, %v1022
        %v1024 = vpop.f32.mrb[0].mxu0
        %1025 = vmatprep.mubr.f32.mxu0 0.0
        %1026 = vmatmul.mubr.f32.gmra.mrb[0].mxu0 %v894
        %v1027 = vpop.f32.mrb[0].mxu0
        %v1028 = vadd.f32 %v924, %v1027
        %v1029 = vpop.f32.mrb[0].mxu0
        %1030 = vmatprep.mubr.f32.mxu0 0.0
        %1031 = vmatmul.mubr.f32.gmra.mrb[0].mxu0 %v895
        %v1032 = vpop.f32.mrb[0].mxu0
        %v1033 = vadd.f32 %v924, %v1032
        %v1034 = vpop.f32.mrb[0].mxu0
        %1035 = vmatprep.mubr.f32.mxu0 0.0
        %1036 = vmatmul.mubr.f32.gmra.mrb[0].mxu0 %v896
        %v1037 = vpop.f32.mrb[0].mxu0
        %v1038 = vadd.f32 %v924, %v1037
        %v1039 = vpop.f32.mrb[0].mxu0
        %1040 = vmatprep.mubr.f32.mxu0 0.0
        %1041 = vmatmul.mubr.f32.gmra.mrb[0].mxu0 %v897
        %v1042 = vpop.f32.mrb[0].mxu0
        %v1043 = vadd.f32 %v924, %v1042
        %v1044 = vpop.f32.mrb[0].mxu0
        %1045 = vmatprep.mubr.f32.mxu0 0.0
        %1046 = vmatmul.mubr.f32.gmra.mrb[0].mxu0 %v898
        %v1047 = vpop.f32.mrb[0].mxu0
        %v1048 = vadd.f32 %v924, %v1047
        %v1049 = vpop.f32.mrb[0].mxu0
        %1050 = vmatprep.mubr.f32.mxu0 0.0
        %1051 = vmatmul.mubr.f32.gmra.mrb[0].mxu0 %v899
        %v1052 = vpop.f32.mrb[0].mxu0
        %v1053 = vadd.f32 %v924, %v1052
        %v1054 = vpop.f32.mrb[0].mxu0
        %1055 = vmatprep.mubr.f32.mxu0 0.0
        %1056 = vmatmul.mubr.f32.gmra.mrb[0].mxu0 %v900
        %v1057 = vpop.f32.mrb[0].mxu0
        %v1058 = vadd.f32 %v924, %v1057
        %v1059 = vpop.f32.mrb[0].mxu0
        %1060 = vmatprep.mubr.f32.mxu0 0.0
        %1061 = vmatmul.mubr.f32.gmra.mrb[0].mxu0 %v901
        %v1062 = vpop.f32.mrb[0].mxu0
        %v1063 = vadd.f32 %v924, %v1062
        %v1064 = vpop.f32.mrb[0].mxu0
        %1065 = vmatprep.mubr.f32.mxu0 0.0
        %1066 = vmatmul.mubr.f32.gmra.mrb[0].mxu0 %v902
        %v1067 = vpop.f32.mrb[0].mxu0
        %v1068 = vadd.f32 %v924, %v1067
        %v1069 = vpop.f32.mrb[0].mxu0
        %1070 = vdwg.mxu0
        %1071 = vst [vmem:[%s287] sm:$0xff] %v993
        %1072 = vst [vmem:[%s287 + $0x8] sm:$0xff] %v998
        %1073 = vst [vmem:[%s287 + $0x10] sm:$0xff] %v1003
        %1074 = vst [vmem:[%s287 + $0x18] sm:$0xff] %v1008
        %1075 = vst [vmem:[%s287 + $0x20] sm:$0xff] %v1013
        %1076 = vst [vmem:[%s287 + $0x28] sm:$0xff] %v1018
        %1077 = vst [vmem:[%s287 + $0x30] sm:$0xff] %v1023
        %1078 = vst [vmem:[%s287 + $0x38] sm:$0xff] %v1028
        %1079 = vst [vmem:[%s287 + $0x40] sm:$0xff] %v1033
        %1080 = vst [vmem:[%s287 + $0x48] sm:$0xff] %v1038
        %1081 = vst [vmem:[%s287 + $0x50] sm:$0xff] %v1043
        %1082 = vst [vmem:[%s287 + $0x58] sm:$0xff] %v1048
        %1083 = vst [vmem:[%s287 + $0x60] sm:$0xff] %v1053
        %1084 = vst [vmem:[%s287 + $0x68] sm:$0xff] %v1058
        %1085 = vst [vmem:[%s287 + $0x70] sm:$0xff] %v1063
        %1086 = vst [vmem:[%s287 + $0x78] sm:$0xff] %v1068
        %s1087 = sand.u32 %s182, 1
        %s1088 = scalar_lea.sflag [#allocation4], %s1087
        %s1089 = sand.u32 %s182, 1
        %s1090 = smul.addr %s1089, 128
        %s1091 = scalar_lea.vmem [#allocation5], %s1090
        // Predicated region
        $region53: #{tpu_custom_call.1} parent=47 // pred_check
          %p1092 = pneg %p192
        $region54: #{tpu_custom_call.1} parent=47 // pred_check_branch
          %1094 = sbr.rel (%p1092) target = $region56
        $region55: #{tpu_custom_call.1} parent=47 // pred_region
          %s1095 = smul.u32 16, %s22
          %s1097 = ssub.s32 2048, 2048
          %1098 = vsyncadd %s1088, %s1097
          %s1099 = smul.addr %s1095, 128
          %s1100 = scalar_lea.hbm %s7, %s1099
          %s1101 = sshll.u32 %s1091, 4
          %s1102 = int_to_ptr.vmem [resolvable:$true] %s1101
          %1107 = dma.vmem_to_hbm [thread:$0]  %s1102, 2048, %s1100, %s1088, 128, 128, 8
        $region56: #{tpu_custom_call.1} parent=47 // pred_fallthru
          _
      $region48: #{tpu_custom_call.1} parent=5 // pred_fallthru
        _
      %p1108 = scmp.le.s32.totalorder 2, %s17
      // Predicated region
      $region57: #{tpu_custom_call.1} parent=5 // pred_check
        %p1109 = pneg %p1108
      $region58: #{tpu_custom_call.1} parent=5 // pred_check_branch
        %1111 = sbr.rel (%p1109) target = $region60
      $region59: #{tpu_custom_call.1} parent=5 // pred_region
        %s1112 = ssub.s32 %s17, 2
        // Predicated region
        $region61: #{tpu_custom_call.1} parent=59 // pred_check
          %p1113 = pneg %p198
        $region62: #{tpu_custom_call.1} parent=59 // pred_check_branch
          %1115 = sbr.rel (%p1113) target = $region64
        $region63: #{tpu_custom_call.1} parent=59 // pred_region
          %s1116 = sand.u32 %s183, 1
          %s1117 = scalar_lea.sflag [#allocation4], %s1116
          %s1118 = sand.u32 %s183, 1
          %s1119 = smul.addr %s1118, 128
          %s1120 = scalar_lea.vmem [#allocation5], %s1119
          %1121 = dma.done %s1117, 2048
        $region64: #{tpu_custom_call.1} parent=59 // pred_fallthru
          _
      $region60: #{tpu_custom_call.1} parent=5 // pred_fallthru
        _
    $region6: #{tpu_custom_call.1} parent=1 // loop_footer
      %s21 = sadd.s32 1, %s17
    $region7: #{tpu_custom_call.1} parent=1 // loop_footer_branch
      %16 = sbr.rel target = $region3
    $region8: #{tpu_custom_call.1} parent=1 // loop_exit
      _
    %1122 = vsyncpa [#allocation3], 1
    %s1123 = scalar_lea.sflag [#allocation3], 1
    %1124 = vsyncpa %s1123, 1
    %1125 = vsyncpa [#allocation4], 1
    %s1126 = scalar_lea.sflag [#allocation4], 1
    %1127 = vsyncpa %s1126, 1

</llo_original>
